<compile_context>
chip_gen: v5e
topology: v5e:2x2
jax: 0.10.0
libtpu: 0.0.40
codegen_flags: <defaults>
</compile_context>

<pallas_src>
import functools

import jax
import jax.numpy as jnp
from jax.experimental import pallas as pl
from jax.experimental.pallas import tpu as pltpu

EPS = 1e-5


def _masked_gn_kernel(lens_ref, x_ref, w_ref, b_ref, o_ref, *, eps):
    # lens_ref: SMEM int32[B]        (scalar-prefetch)
    # x_ref   : VMEM [1, TC, T]      (one batch element, one channel tile)
    # w_ref   : VMEM f32[1, TC, 1]
    # b_ref   : VMEM f32[1, TC, 1]
    # o_ref   : VMEM [1, TC, T]
    b = pl.program_id(0)
    length = lens_ref[b]

    x = x_ref[...].astype(jnp.float32)                       # (1, TC, T)
    t = x.shape[-1]

    # Time mask built at (1, 1, T); broadcasts against (1, TC, T).
    t_ids = jax.lax.broadcasted_iota(jnp.int32, (1, 1, t), 2)
    mask = t_ids < length

    # NOTE: x_lens[b] == 0 yields inf/NaN, identical to the PyTorch reference.
    inv_cnt = 1.0 / length.astype(jnp.float32)

    # Two-pass masked stats (avoids E[x^2]-mean^2 cancellation).
    x_masked = jnp.where(mask, x, 0.0)
    mean = jnp.sum(x_masked, axis=-1, keepdims=True) * inv_cnt        # (1, TC, 1)
    diff = jnp.where(mask, x - mean, 0.0)
    var = jnp.sum(diff * diff, axis=-1, keepdims=True) * inv_cnt      # (1, TC, 1)

    # Fold mean/rsqrt/affine into per-channel scale & shift; single
    # elementwise pass over the full tile.
    scale = w_ref[...] * jax.lax.rsqrt(var + eps)                     # (1, TC, 1)
    shift = b_ref[...] - mean * scale                                 # (1, TC, 1)
    o_ref[...] = (x * scale + shift).astype(o_ref.dtype)


def _round_up(n, m):
    return ((n + m - 1) // m) * m


def masked_group_norm(x, x_lens, weight, bias, *, eps=EPS):
    """x: [B, C, T] (f32 or bf16), x_lens: int[B], weight/bias: [C]."""
    B, C, T = x.shape
    out_dtype = x.dtype
    itemsize = jnp.dtype(out_dtype).itemsize

    # Lane-dense time dimension.
    t_pad = _round_up(T, 128)

    # Channel tile: multiple of the sublane packing (8 for f32, 16 for bf16),
    # sized so the pipelined in+out double-buffers stay well under the
    # scoped-VMEM budget on every generation (incl. v7x's 64 MiB physical).
    c_align = 16 if itemsize == 2 else 8
    pipeline_budget = 8 * 1024 * 1024                    # 2 bufs x (in+out)
    max_tc = pipeline_budget // (4 * t_pad * itemsize)
    max_tc = max(c_align, (max_tc // c_align) * c_align)
    tc = min(max_tc, _round_up(C, c_align))
    c_pad = _round_up(C, tc)

    needs_pad = (t_pad != T) or (c_pad != C)
    if needs_pad:
        x = jnp.pad(x, ((0, 0), (0, c_pad - C), (0, t_pad - T)))

    w = jnp.pad(weight.astype(jnp.float32), (0, c_pad - C)).reshape(1, c_pad, 1)
    b = jnp.pad(bias.astype(jnp.float32), (0, c_pad - C)).reshape(1, c_pad, 1)
    lens = x_lens.astype(jnp.int32)

    grid = (B, c_pad // tc)

    cost = pl.CostEstimate(
        flops=10 * B * c_pad * t_pad,
        transcendentals=B * c_pad,
        bytes_accessed=2 * B * c_pad * t_pad * itemsize,
    )

    out = pl.pallas_call(
        functools.partial(_masked_gn_kernel, eps=eps),
        out_shape=jax.ShapeDtypeStruct((B, c_pad, t_pad), out_dtype),
        grid_spec=pltpu.PrefetchScalarGridSpec(
            num_scalar_prefetch=1,
            grid=grid,
            in_specs=[
                pl.BlockSpec((1, tc, t_pad), lambda bi, ci, lens_r: (bi, ci, 0)),
                pl.BlockSpec((1, tc, 1), lambda bi, ci, lens_r: (0, ci, 0)),
                pl.BlockSpec((1, tc, 1), lambda bi, ci, lens_r: (0, ci, 0)),
            ],
            out_specs=pl.BlockSpec((1, tc, t_pad), lambda bi, ci, lens_r: (bi, ci, 0)),
        ),
        compiler_params=pltpu.CompilerParams(
            dimension_semantics=("parallel", "parallel"),
            vmem_limit_bytes=32 * 1024 * 1024,
        ),
        cost_estimate=cost,
    )(lens, x, w, b)

    if needs_pad:
        out = out[:, :C, :T]
    return out


def _reference(x, x_lens, weight, bias, eps=EPS):
    """Pure-JAX reference matching the PyTorch module semantics."""
    B, C, T = x.shape
    t_ids = jnp.arange(T)[None, None, :]
    mask = t_ids < x_lens[:, None, None]
    cnt = x_lens.astype(jnp.float32)[:, None, None]
    xm = jnp.where(mask, x, 0.0)
    mean = jnp.sum(xm, axis=-1, keepdims=True) / cnt
    var = jnp.sum(jnp.where(mask, (x - mean) ** 2, 0.0), axis=-1, keepdims=True) / cnt
    out = (x - mean) / jnp.sqrt(var + eps)
    return out * weight[None, :, None] + bias[None, :, None]


if __name__ == "__main__":
    key = jax.random.PRNGKey(0)
    k_x, k_w, k_b = jax.random.split(key, 3)

    B, C, T = 2, 4, 16                      # num_groups == num_channels == C
    x = jax.random.normal(k_x, (B, C, T), dtype=jnp.float32)
    x_lens = jnp.array([16, 10], dtype=jnp.int32)

    # nn.GroupNorm default init is weight=1, bias=0; use deterministic
    # non-trivial affine params to exercise that path.
    weight = 1.0 + 0.1 * jax.random.normal(k_w, (C,), dtype=jnp.float32)
    bias = 0.1 * jax.random.normal(k_b, (C,), dtype=jnp.float32)

    out = masked_group_norm(x, x_lens, weight, bias)
    out = jax.block_until_ready(out)

    ref = _reference(x, x_lens, weight, bias)
    assert out.shape == ref.shape, "shape mismatch vs reference"
    assert jnp.allclose(out, ref, atol=1e-5, rtol=1e-5), "mismatch vs reference"

    print("KERNEL_OK")
</pallas_src>

<mosaic_0001>
module attributes {stable_mosaic.version = 11 : i64} {
  func.func @_masked_gn_kernel(%arg0: i32, %arg1: i32, %arg2: memref<2xi32, #tpu.memory_space<smem>>, %arg3: memref<1x8x128xf32, #tpu.memory_space<vmem>>, %arg4: memref<1x8x1xf32, #tpu.memory_space<vmem>>, %arg5: memref<1x8x1xf32, #tpu.memory_space<vmem>>, %arg6: memref<1x8x128xf32, #tpu.memory_space<vmem>>) attributes {dimension_semantics = [#tpu.dimension_semantics<parallel>, #tpu.dimension_semantics<parallel>], iteration_bounds = array<i64: 2, 1>, scalar_prefetch = 1 : i64, scratch_operands = 0 : i64, tpu.core_type = #tpu.core_type<tc>, window_params = [{transform_indices = @transform_0, window_bounds = array<i64: 1, 8, 128>}, {transform_indices = @transform_1, window_bounds = array<i64: 1, 8, 1>}, {transform_indices = @transform_2, window_bounds = array<i64: 1, 8, 1>}, {transform_indices = @transform_3, window_bounds = array<i64: 1, 8, 128>}]} {
    %0 = arith.index_cast %arg0 : i32 to index
    %1 = memref.load %arg2[%0] : memref<2xi32, #tpu.memory_space<smem>>
    %c0 = arith.constant 0 : index
    %c0_0 = arith.constant 0 : index
    %c0_1 = arith.constant 0 : index
    %2 = vector.load %arg3[%c0, %c0_0, %c0_1] : memref<1x8x128xf32, #tpu.memory_space<vmem>>, vector<1x8x128xf32>
    %3 = tpu.iota {dimensions = array<i32: 2>} : vector<1x1x128xi32>
    %4 = vector.broadcast %1 : i32 to vector<1x1x128xi32>
    %5 = arith.cmpi slt, %3, %4 : vector<1x1x128xi32>
    %6 = arith.sitofp %1 : i32 to f32
    %cst = arith.constant 1.000000e+00 : f32
    %7 = arith.divf %cst, %6 : f32
    %cst_2 = arith.constant 0.000000e+00 : f32
    %8 = vector.shape_cast %5 : vector<1x1x128xi1> to vector<1x1x128xi1>
    %9 = vector.broadcast %8 : vector<1x1x128xi1> to vector<1x8x128xi1>
    %10 = vector.broadcast %cst_2 : f32 to vector<1x8x128xf32>
    %11 = arith.select %9, %2, %10 : vector<1x8x128xi1>, vector<1x8x128xf32>
    %cst_3 = arith.constant dense<0.000000e+00> : vector<1x8xf32>
    %12 = vector.multi_reduction <add>, %11, %cst_3 [2] : vector<1x8x128xf32> to vector<1x8xf32>
    %13 = vector.shape_cast %12 : vector<1x8xf32> to vector<1x8x1xf32>
    %14 = vector.broadcast %7 : f32 to vector<1x8x1xf32>
    %15 = arith.mulf %13, %14 : vector<1x8x1xf32>
    %16 = vector.broadcast %15 : vector<1x8x1xf32> to vector<1x8x128xf32>
    %17 = arith.subf %2, %16 : vector<1x8x128xf32>
    %cst_4 = arith.constant 0.000000e+00 : f32
    %18 = vector.shape_cast %5 : vector<1x1x128xi1> to vector<1x1x128xi1>
    %19 = vector.broadcast %18 : vector<1x1x128xi1> to vector<1x8x128xi1>
    %20 = vector.broadcast %cst_4 : f32 to vector<1x8x128xf32>
    %21 = arith.select %19, %17, %20 : vector<1x8x128xi1>, vector<1x8x128xf32>
    %22 = arith.mulf %21, %21 : vector<1x8x128xf32>
    %cst_5 = arith.constant dense<0.000000e+00> : vector<1x8xf32>
    %23 = vector.multi_reduction <add>, %22, %cst_5 [2] : vector<1x8x128xf32> to vector<1x8xf32>
    %24 = vector.shape_cast %23 : vector<1x8xf32> to vector<1x8x1xf32>
    %25 = vector.broadcast %7 : f32 to vector<1x8x1xf32>
    %26 = arith.mulf %24, %25 : vector<1x8x1xf32>
    %c0_6 = arith.constant 0 : index
    %c0_7 = arith.constant 0 : index
    %c0_8 = arith.constant 0 : index
    %27 = vector.load %arg4[%c0_6, %c0_7, %c0_8] : memref<1x8x1xf32, #tpu.memory_space<vmem>>, vector<1x8x1xf32>
    %cst_9 = arith.constant 9.99999974E-6 : f32
    %28 = vector.broadcast %cst_9 : f32 to vector<1x8x1xf32>
    %29 = arith.addf %26, %28 : vector<1x8x1xf32>
    %30 = math.rsqrt %29 : vector<1x8x1xf32>
    %31 = arith.mulf %27, %30 : vector<1x8x1xf32>
    %c0_10 = arith.constant 0 : index
    %c0_11 = arith.constant 0 : index
    %c0_12 = arith.constant 0 : index
    %32 = vector.load %arg5[%c0_10, %c0_11, %c0_12] : memref<1x8x1xf32, #tpu.memory_space<vmem>>, vector<1x8x1xf32>
    %33 = arith.mulf %15, %31 : vector<1x8x1xf32>
    %34 = arith.subf %32, %33 : vector<1x8x1xf32>
    %35 = vector.broadcast %31 : vector<1x8x1xf32> to vector<1x8x128xf32>
    %36 = arith.mulf %2, %35 : vector<1x8x128xf32>
    %37 = vector.broadcast %34 : vector<1x8x1xf32> to vector<1x8x128xf32>
    %38 = arith.addf %36, %37 : vector<1x8x128xf32>
    %c0_13 = arith.constant 0 : index
    %c0_14 = arith.constant 0 : index
    %c0_15 = arith.constant 0 : index
    %39 = vector.load %arg6[%c0_13, %c0_14, %c0_15] : memref<1x8x128xf32, #tpu.memory_space<vmem>>, vector<1x8x128xf32>
    tpu.vector_store %arg6[%c0_13, %c0_14, %c0_15], %38 {strides = array<i32>} : memref<1x8x128xf32, #tpu.memory_space<vmem>>, vector<1x8x128xf32>,
    return
  }
  func.func @transform_0(%arg0: i32, %arg1: i32, %arg2: memref<2xi32, #tpu.memory_space<smem>>) -> (i32, i32, i32) {
    %c0_i32 = arith.constant 0 : i32
    %c0_i32_0 = arith.constant 0 : i32
    return %arg0, %arg1, %c0_i32 : i32, i32, i32
  }
  func.func @transform_1(%arg0: i32, %arg1: i32, %arg2: memref<2xi32, #tpu.memory_space<smem>>) -> (i32, i32, i32) {
    %c0_i32 = arith.constant 0 : i32
    %c0_i32_0 = arith.constant 0 : i32
    %c0_i32_1 = arith.constant 0 : i32
    return %c0_i32, %arg1, %c0_i32_0 : i32, i32, i32
  }
  func.func @transform_2(%arg0: i32, %arg1: i32, %arg2: memref<2xi32, #tpu.memory_space<smem>>) -> (i32, i32, i32) {
    %c0_i32 = arith.constant 0 : i32
    %c0_i32_0 = arith.constant 0 : i32
    %c0_i32_1 = arith.constant 0 : i32
    return %c0_i32, %arg1, %c0_i32_0 : i32, i32, i32
  }
  func.func @transform_3(%arg0: i32, %arg1: i32, %arg2: memref<2xi32, #tpu.memory_space<smem>>) -> (i32, i32, i32) {
    %c0_i32 = arith.constant 0 : i32
    %c0_i32_0 = arith.constant 0 : i32
    return %arg0, %arg1, %c0_i32 : i32, i32, i32
  }
}

</mosaic_0001>

<llo_original>
// kernel: tpu_custom_call.1
$region0: #{tpu_custom_call.1}
  #allocation0 [shape = 'u32[]', space=smem, size = 0x4, offset = 0x4, fixed_abs, tag = 'smem constant byte address 0x4 - core index']
  #allocation1 [shape = 'u32[72,128]{1,0:T(1,128)}', space=vmem, size = 0x9000, scoped, tag = 'internal scratch']
  #allocation2 [shape = 's32[1]{0}', space=sflag, size = 0x4, scoped, tag = 'scoped memory for tpu_custom_call.1']
  #allocation3 [shape = 'u8[512]{0}', space=smem, size = 0x200, scoped, tag = 'prefetched SMEM operand 0']
  %s0 = inlined_call_operand.vmem [shape: s32[2], index: 0, kind: input, shape index: {}]
  %s1 = inlined_call_operand.vmem [shape: f32[2,8,128], index: 1, kind: input, shape index: {}]
  %s2 = inlined_call_operand.vmem [shape: f32[1,8,1], index: 2, kind: input, shape index: {}]
  %s3 = inlined_call_operand.vmem [shape: f32[1,8,1], index: 3, kind: input, shape index: {}]
  %s4 = inlined_call_operand.hbm [shape: f32[2,8,128], index: 4, kind: output, shape index: {}]
  %s5 = sld [smem:[#allocation0]]
  $region45: #{tpu_custom_call.1} parent=0
    _
  %s7 = ssub.s32 1, %s5
  %s8 = scalar_select 0, %s7, %s5
  %s10 = sshll.u32 %s0, 4
  %s11 = int_to_ptr.vmem [resolvable:$true] %s10
  %13 = dma.vmem_to_smem %s11, 16, [#allocation3], [#allocation2]
  %15 = dma.done [#allocation2], 16
  %16 = sfence
  $region1: #{tpu_custom_call.1} parent=0
    #allocation4 [shape = 'u8[8192]{0}', space=vmem, size = 0x2000, scoped, tag = 'output window, operand 0']
    #allocation5 [shape = 's32[2]{0}', space=sflag, size = 0x8, scoped, tag = 'scoped memory for tpu_custom_call.1']
    %17 = vsyncpa [#allocation5], 0
    %s18 = scalar_lea.sflag [#allocation5], 1
    %19 = vsyncpa %s18, 0
    loop: start=0, step=1, limit=4
    $region2: #{tpu_custom_call.1} parent=1 // loop_pre_header
      _
    $region3: #{tpu_custom_call.1} parent=1 // loop_header
      %s21 = sphi 0, %s25
      %p22 = scmp.ge.s32.totalorder %s21, 4
      %s28 = sphi 0, %s40
      %s29 = sphi 0, %s36
      %s30 = sphi 0, %s28
      %s31 = sphi 0, %s29
      %s32 = sphi 0, %s30
      %s33 = sphi 0, %s31
      %s45 = sphi 0, %s47
      %s48 = sphi 0, %s45
      %s49 = sphi 0, %s48
      %s65 = sphi 0, %s49
      %s71 = sphi 0, %s73
      %s74 = sphi 0, %s71
      %s75 = sphi 0, %s74
      %s91 = sphi 0, %s75
      %s97 = sphi 0, %s99
      %s100 = sphi 0, %s97
      %s101 = sphi 0, %s100
      %s117 = sphi 0, %s101
      %s125 = sphi 0, %s127
      %s128 = sphi 0, %s125
      %s129 = sphi 0, %s128
      %s145 = sphi 0, %s129
    $region4: #{tpu_custom_call.1} parent=1 // loop_header_branch
      %24 = sbr.rel (%p22) target = $region8
    $region5: #{tpu_custom_call.1} parent=1 // loop_body
      %s26 = ssub.s32 %s21, 1
      %s27 = ssub.s32 %s21, 2
      %s34 = sadd.s32 1, %s29
      %p35 = scmp.ge.s32.totalorder %s34, 1
      %s36 = scalar_select %p35, 0, %s34
      %s37 = sadd.s32 1, %s28
      %s38 = scalar_select %p35, %s37, %s28
      %p39 = scmp.ge.s32.totalorder %s38, 2
      %s40 = scalar_select %p39, 0, %s38
      %s41 = ssub.s32 %s28, %s40
      %s42 = ssub.s32 %s29, %s36
      %s43 = sor.u32 %s41, %s42
      %p44 = scmp.eq.s32.totalorder %s43, 0
      %s46 = sadd.s32 %s45, 1
      %s47 = scalar_select %p44, %s45, %s46
      %p50 = pneg %p44
      %p51 = scmp.eq.s32.totalorder %s21, 1
      %p52 = por %p50, %p51
      %p53 = scmp.ne.s32.totalorder %s45, %s48
      %p54 = scmp.eq.s32.totalorder %s21, 0
      %p55 = por %p53, %p54
      %p56 = scmp.ne.s32.totalorder %s45, %s48
      %p57 = scmp.eq.s32.totalorder %s26, 1
      %p58 = por %p56, %p57
      %p59 = scmp.ne.s32.totalorder %s48, %s49
      %p60 = scmp.eq.s32.totalorder %s26, 0
      %p61 = por %p59, %p60
      %p62 = scmp.ne.s32.totalorder %s48, %s49
      %p63 = scmp.eq.s32.totalorder %s27, 1
      %p64 = por %p62, %p63
      %p66 = scmp.ne.s32.totalorder %s49, %s65
      %p67 = scmp.eq.s32.totalorder %s27, 0
      %p68 = por %p66, %p67
      %s69 = ssub.s32 %s29, %s36
      %p70 = scmp.eq.s32.totalorder %s69, 0
      %s72 = sadd.s32 %s71, 1
      %s73 = scalar_select %p70, %s71, %s72
      %p76 = pneg %p70
      %p77 = scmp.eq.s32.totalorder %s21, 1
      %p78 = por %p76, %p77
      %p79 = scmp.ne.s32.totalorder %s71, %s74
      %p80 = scmp.eq.s32.totalorder %s21, 0
      %p81 = por %p79, %p80
      %p82 = scmp.ne.s32.totalorder %s71, %s74
      %p83 = scmp.eq.s32.totalorder %s26, 1
      %p84 = por %p82, %p83
      %p85 = scmp.ne.s32.totalorder %s74, %s75
      %p86 = scmp.eq.s32.totalorder %s26, 0
      %p87 = por %p85, %p86
      %p88 = scmp.ne.s32.totalorder %s74, %s75
      %p89 = scmp.eq.s32.totalorder %s27, 1
      %p90 = por %p88, %p89
      %p92 = scmp.ne.s32.totalorder %s75, %s91
      %p93 = scmp.eq.s32.totalorder %s27, 0
      %p94 = por %p92, %p93
      %s95 = ssub.s32 %s29, %s36
      %p96 = scmp.eq.s32.totalorder %s95, 0
      %s98 = sadd.s32 %s97, 1
      %s99 = scalar_select %p96, %s97, %s98
      %p102 = pneg %p96
      %p103 = scmp.eq.s32.totalorder %s21, 1
      %p104 = por %p102, %p103
      %p105 = scmp.ne.s32.totalorder %s97, %s100
      %p106 = scmp.eq.s32.totalorder %s21, 0
      %p107 = por %p105, %p106
      %p108 = scmp.ne.s32.totalorder %s97, %s100
      %p109 = scmp.eq.s32.totalorder %s26, 1
      %p110 = por %p108, %p109
      %p111 = scmp.ne.s32.totalorder %s100, %s101
      %p112 = scmp.eq.s32.totalorder %s26, 0
      %p113 = por %p111, %p112
      %p114 = scmp.ne.s32.totalorder %s100, %s101
      %p115 = scmp.eq.s32.totalorder %s27, 1
      %p116 = por %p114, %p115
      %p118 = scmp.ne.s32.totalorder %s101, %s117
      %p119 = scmp.eq.s32.totalorder %s27, 0
      %p120 = por %p118, %p119
      %s121 = ssub.s32 %s28, %s40
      %s122 = ssub.s32 %s29, %s36
      %s123 = sor.u32 %s121, %s122
      %p124 = scmp.eq.s32.totalorder %s123, 0
      %s126 = sadd.s32 %s125, 1
      %s127 = scalar_select %p124, %s125, %s126
      %p130 = pneg %p124
      %p131 = scmp.eq.s32.totalorder %s21, 1
      %p132 = por %p130, %p131
      %p133 = scmp.ne.s32.totalorder %s125, %s128
      %p134 = scmp.eq.s32.totalorder %s21, 0
      %p135 = por %p133, %p134
      %p136 = scmp.ne.s32.totalorder %s125, %s128
      %p137 = scmp.eq.s32.totalorder %s26, 1
      %p138 = por %p136, %p137
      %p139 = scmp.ne.s32.totalorder %s128, %s129
      %p140 = scmp.eq.s32.totalorder %s26, 0
      %p141 = por %p139, %p140
      %p142 = scmp.ne.s32.totalorder %s128, %s129
      %p143 = scmp.eq.s32.totalorder %s27, 1
      %p144 = por %p142, %p143
      %p146 = scmp.ne.s32.totalorder %s129, %s145
      %p147 = scmp.eq.s32.totalorder %s27, 0
      %p148 = por %p146, %p147
      %p149 = scmp.le.s32.totalorder 1, %s21
      %p150 = scmp.lt.s32.totalorder %s21, 3
      %p151 = pnand %p149, %p150
      %p152 = pneg %p151
      // Predicated region
      $region9: #{tpu_custom_call.1} parent=5 // pred_check
        _
      $region10: #{tpu_custom_call.1} parent=5 // pred_check_branch
        %154 = sbr.rel (%p151) target = $region12
      $region11: #{tpu_custom_call.1} parent=5 // pred_region
        %s155 = ssub.s32 %s21, 1
        // Predicated region
        $region13: #{tpu_custom_call.1} parent=11 // pred_check
          %p156 = pneg %p87
        $region14: #{tpu_custom_call.1} parent=11 // pred_check_branch
          %158 = sbr.rel (%p156) target = $region16
        $region15: #{tpu_custom_call.1} parent=11 // pred_region
          %p159 = scmp.lt.s32.totalorder %s31, 0
          %s160 = scalar_select %p159, %s31, 0
          %s161 = smul.addr %s160, 8
          %s162 = scalar_lea.vmem %s2, %s161
        $region16: #{tpu_custom_call.1} parent=11 // pred_fallthru
          _
        // Predicated region
        $region17: #{tpu_custom_call.1} parent=11 // pred_check
          %p163 = pneg %p113
        $region18: #{tpu_custom_call.1} parent=11 // pred_check_branch
          %165 = sbr.rel (%p163) target = $region20
        $region19: #{tpu_custom_call.1} parent=11 // pred_region
          %p166 = scmp.lt.s32.totalorder %s31, 0
          %s167 = scalar_select %p166, %s31, 0
          %s168 = smul.addr %s167, 8
          %s169 = scalar_lea.vmem %s3, %s168
        $region20: #{tpu_custom_call.1} parent=11 // pred_fallthru
          _
      $region12: #{tpu_custom_call.1} parent=5 // pred_fallthru
        _
      %p170 = scmp.lt.s32.totalorder %s21, 2
      // Predicated region
      $region21: #{tpu_custom_call.1} parent=5 // pred_check
        %p171 = pneg %p170
      $region22: #{tpu_custom_call.1} parent=5 // pred_check_branch
        %173 = sbr.rel (%p171) target = $region24
      $region23: #{tpu_custom_call.1} parent=5 // pred_region
        // Predicated region
        $region25: #{tpu_custom_call.1} parent=23 // pred_check
          %p174 = pneg %p55
        $region26: #{tpu_custom_call.1} parent=23 // pred_check_branch
          %176 = sbr.rel (%p174) target = $region28
        $region27: #{tpu_custom_call.1} parent=23 // pred_region
          %p177 = scmp.lt.s32.totalorder %s28, 1
          %s178 = scalar_select %p177, %s28, 1
          %p179 = scmp.lt.s32.totalorder %s29, 0
          %s180 = scalar_select %p179, %s29, 0
          %s181 = sadd.s32 %s180, %s178
          %s182 = smul.addr %s181, 8
          %s183 = scalar_lea.vmem %s1, %s182
        $region28: #{tpu_custom_call.1} parent=23 // pred_fallthru
          _
      $region24: #{tpu_custom_call.1} parent=5 // pred_fallthru
        _
      %p184 = scmp.le.s32.totalorder 1, %s21
      %p185 = scmp.lt.s32.totalorder %s21, 3
      %p186 = pnand %p184, %p185
      %p187 = pneg %p186
      // Predicated region
      $region29: #{tpu_custom_call.1} parent=5 // pred_check
        _
      $region30: #{tpu_custom_call.1} parent=5 // pred_check_branch
        %189 = sbr.rel (%p186) target = $region32
      $region31: #{tpu_custom_call.1} parent=5 // pred_region
        %s190 = ssub.s32 %s21, 1
        %p191 = scmp.lt.s32.totalorder %s30, 1
        %s192 = scalar_select %p191, %s30, 1
        %p193 = scmp.lt.s32.totalorder %s31, 0
        %s194 = scalar_select %p193, %s31, 0
        %s195 = sadd.s32 %s194, %s192
        %s196 = smul.addr %s195, 8
        %s197 = scalar_lea.vmem %s1, %s196
        %p198 = pneg %p61
        %p199 = pneg %p58
        %p200 = scmp.lt.s32.totalorder %s31, 0
        %s201 = scalar_select %p200, %s31, 0
        %s202 = smul.addr %s201, 8
        %s203 = scalar_lea.vmem %s2, %s202
        %p204 = pneg %p87
        %p205 = pneg %p84
        %p206 = scmp.lt.s32.totalorder %s31, 0
        %s207 = scalar_select %p206, %s31, 0
        %s208 = smul.addr %s207, 8
        %s209 = scalar_lea.vmem %s3, %s208
        %p210 = pneg %p113
        %p211 = pneg %p110
        %p212 = pneg %p141
        %p213 = pneg %p138
        %s214 = sand.u32 %s128, 1
        %s215 = scalar_lea.sflag [#allocation5], %s214
        %s216 = sand.u32 %s128, 1
        %s217 = smul.addr %s216, 8
        %s218 = scalar_lea.vmem [#allocation4], %s217
        %p219 = scmp.lt.s32.totalorder %s30, 1
        %s220 = scalar_select %p219, %s30, 1
        %p221 = scmp.lt.s32.totalorder %s31, 0
        %s222 = scalar_select %p221, %s31, 0
        %s223 = sadd.s32 %s222, %s220
        %s224 = smul.addr %s223, 8
        %s225 = scalar_lea.vmem %s1, %s224
        %p226 = scmp.lt.s32.totalorder %s31, 0
        %s227 = scalar_select %p226, %s31, 0
        %s228 = smul.addr %s227, 8
        %s229 = scalar_lea.vmem %s2, %s228
        %p230 = scmp.lt.s32.totalorder %s31, 0
        %s231 = scalar_select %p230, %s31, 0
        %s232 = smul.addr %s231, 8
        %s233 = scalar_lea.vmem %s3, %s232
        %s234 = sld [smem:[#allocation3 + %s30]]
        %v235 = vld [vmem:[%s225] sm:$0xff]
        %v236 = vlaneseq
        %v237 = vand.u32 %v236, 127
        %v238 = vstv %s234
        %vm239 = vcmp.lt.s32.totalorder %v237, %v238
        %s240 = scvt.s32.f32 %s234
        %v241 = vstv %s240
        %v242 = vrcp.pop %v241
        %v243 = vmul.f32 %v241, %v242
        %v244 = vsub.f32 1.0, %v243
        %v245 = vmul.f32 %v242, %v244
        %v246 = vadd.f32 %v242, %v245
        %vm247 = vweird.f32 %v241
        %vm248 = vweird.f32 %v242
        %vm249 = vmor %vm247, %vm248
        %v250 = vsel %vm249, %v242, %v246
        %v251 = vand.u32 2147483647, %v241
        %vm252 = vcmp.eq.f32.partialorder %v251, 8.507059e+37
        %v253 = vand.u32 %v241, 2147483648
        %v254 = vor.u32 1.1754944e-38, %v253
        %v255 = vsel %vm252, %v254, %v250
        %s256 = vtos %v255
        %v257 = vsel %vm239, 1, 0
        %vm258 = vcmp.eq.s32.totalorder %v257, 1
        %v259 = vsel %vm258, %v235, 0.0
        %260 = vadd.xlane.f32.xlu0 %v259
        %v261 = vpop.xlane.xlu0 %260
        %v262 = vstv %s256
        %v263 = vmul.f32 %v261, %v262
        %v264 = vsub.f32 %v235, %v263
        %v265 = vsel %vm258, %v264, 0.0
        %v266 = vmul.f32 %v265, %v265
        %267 = vadd.xlane.f32.xlu0 %v266
        %v268 = vpop.xlane.xlu0 %267
        %v269 = vmul.f32 %v268, %v262
        %v270 = vld [vmem:[%s229] sm:$0xff]
        %v271 = vadd.f32 %v269, 1e-05
        %v272 = vrsqrt.pop %v271
        %v273 = vmul.f32 %v272, %v271
        %v274 = vmul.f32 %v273, %v272
        %v275 = vmul.f32 0.5, %v274
        %v276 = vsub.f32 1.5, %v275
        %v277 = vmul.f32 %v272, %v276
        %vm278 = vweird.f32 %v271
        %vm279 = vweird.f32 %v272
        %vm280 = vmor %vm278, %vm279
        %v281 = vsel %vm280, %v272, %v277
        %v282 = vmul.f32 %v270, %v281
        %v283 = vld [vmem:[%s233] sm:$0xff]
        %v284 = vmul.f32 %v263, %v282
        %v285 = vsub.f32 %v283, %v284
        %287 = vset.pattern.permute.xlu0 0
        %288 = vperm.xlu0 %287, %v282
        %v289 = vpop.permute.xlu0 %288
        %v291 = vmul.f32 %v235, %v289
        %293 = vset.pattern.permute.xlu0 0
        %294 = vperm.xlu0 %293, %v285
        %v295 = vpop.permute.xlu0 %294
        %v297 = vadd.f32 %v291, %v295
        %298 = vst [vmem:[%s218] sm:$0xff] %v297
        %s299 = sand.u32 %s128, 1
        %s300 = scalar_lea.sflag [#allocation5], %s299
        %s301 = sand.u32 %s128, 1
        %s302 = smul.addr %s301, 8
        %s303 = scalar_lea.vmem [#allocation4], %s302
        // Predicated region
        $region33: #{tpu_custom_call.1} parent=31 // pred_check
          %p304 = pneg %p138
        $region34: #{tpu_custom_call.1} parent=31 // pred_check_branch
          %306 = sbr.rel (%p304) target = $region36
        $region35: #{tpu_custom_call.1} parent=31 // pred_region
          %308 = vsyncadd %s300, 0
          %s309 = sadd.s32 %s31, %s30
          %s310 = smul.addr %s309, 8
          %s311 = scalar_lea.hbm %s4, %s310
          %s313 = sshll.u32 %s303, 4
          %s314 = int_to_ptr.vmem [resolvable:$true] %s313
          %s315 = sshll.u32 %s311, 4
          %s316 = int_to_ptr.hbm [resolvable:$true] %s315
          %318 = dma.vmem_to_hbm [thread:$0]  %s314, 128, %s316, %s300
        $region36: #{tpu_custom_call.1} parent=31 // pred_fallthru
          _
      $region32: #{tpu_custom_call.1} parent=5 // pred_fallthru
        _
      %p319 = scmp.le.s32.totalorder 2, %s21
      // Predicated region
      $region37: #{tpu_custom_call.1} parent=5 // pred_check
        %p320 = pneg %p319
      $region38: #{tpu_custom_call.1} parent=5 // pred_check_branch
        %322 = sbr.rel (%p320) target = $region40
      $region39: #{tpu_custom_call.1} parent=5 // pred_region
        %s323 = ssub.s32 %s21, 2
        // Predicated region
        $region41: #{tpu_custom_call.1} parent=39 // pred_check
          %p324 = pneg %p144
        $region42: #{tpu_custom_call.1} parent=39 // pred_check_branch
          %326 = sbr.rel (%p324) target = $region44
        $region43: #{tpu_custom_call.1} parent=39 // pred_region
          %s327 = sand.u32 %s129, 1
          %s328 = scalar_lea.sflag [#allocation5], %s327
          %s329 = sand.u32 %s129, 1
          %s330 = smul.addr %s329, 8
          %s331 = scalar_lea.vmem [#allocation4], %s330
          %333 = dma.done %s328, 128
        $region44: #{tpu_custom_call.1} parent=39 // pred_fallthru
          _
      $region40: #{tpu_custom_call.1} parent=5 // pred_fallthru
        _
    $region6: #{tpu_custom_call.1} parent=1 // loop_footer
      %s25 = sadd.s32 1, %s21
    $region7: #{tpu_custom_call.1} parent=1 // loop_footer_branch
      %20 = sbr.rel target = $region3
    $region8: #{tpu_custom_call.1} parent=1 // loop_exit
      _
    %334 = vsyncpa [#allocation5], 1
    %s335 = scalar_lea.sflag [#allocation5], 1
    %336 = vsyncpa %s335, 1

</llo_original>
